<compile_context>
chip_gen: v5e
topology: v5e:2x2
jax: 0.10.0
libtpu: 0.0.40
codegen_flags: <defaults>
</compile_context>

<pallas_src>
import functools

import jax
import jax.numpy as jnp
from jax import lax
from jax.experimental import pallas as pl
from jax.experimental.pallas import tpu as pltpu

BN_EPS = 1e-5


# ---------------------------------------------------------------------------
# Shared in-kernel helpers
# ---------------------------------------------------------------------------
def _fill_slab(x_ref, slab_ref, halo, hw):
    """Zero-halo'd activation slab: [zeros(halo) | x | zeros(halo)] on the lane axis."""
    slab_ref[...] = jnp.zeros(slab_ref.shape, slab_ref.dtype)
    slab_ref[:, :, halo:halo + hw] = x_ref[...].astype(slab_ref.dtype)


def _column_masks(hw, width):
    """Lane-validity masks for dw = -1 / +1 taps (column wrap across row boundaries)."""
    col = lax.rem(lax.broadcasted_iota(jnp.int32, (1, hw), 1), width)
    return col != 0, col != (width - 1)


def _conv3x3_one(b, slab_ref, taps_ref, w_mat, ok_left, ok_right, *,
                 width, halo, hw, cin, cin_pad):
    """3x3 conv for batch element `b`: build the stacked (9*cin_pad, HW) tap slab in
    VMEM (lane-shifted views of the zero-halo'd slab + column masks) and run ONE fat
    MXU contraction instead of nine tiny K=Cin dots."""
    for k in range(9):
        dh, dw = k // 3 - 1, k % 3 - 1
        start = halo + dh * width + dw                    # static, >= 0
        piece = slab_ref[b, :, start:start + hw]          # (Cin, HW) lane-shifted tap
        if dw == -1:                                      # wrapped lanes contribute 0
            piece = jnp.where(ok_left, piece, 0.0)
        elif dw == 1:
            piece = jnp.where(ok_right, piece, 0.0)
        taps_ref[k * cin_pad:k * cin_pad + cin, :] = piece
    return lax.dot_general(                               # (Cout, 9*cin_pad) x (9*cin_pad, HW)
        w_mat, taps_ref[...],
        dimension_numbers=(((1,), (0,)), ((), ())),
        preferred_element_type=jnp.float32)


# ---------------------------------------------------------------------------
# Pass 1: conv (VMEM-only) -> per-batch-element channel sum / sum-of-squares
# ---------------------------------------------------------------------------
def _conv_stats_kernel(x_ref, w_ref, stats_ref, slab_ref, taps_ref, *, width):
    bt, cin, hw = x_ref.shape
    halo = width + 1
    cin_pad = taps_ref.shape[0] // 9

    if cin_pad != cin:                                    # zero-padded K rows stay zero
        taps_ref[...] = jnp.zeros(taps_ref.shape, taps_ref.dtype)
    _fill_slab(x_ref, slab_ref, halo, hw)
    ok_left, ok_right = _column_masks(hw, width)
    w_mat = w_ref[...]

    for b in range(bt):
        acc = _conv3x3_one(b, slab_ref, taps_ref, w_mat, ok_left, ok_right,
                           width=width, halo=halo, hw=hw, cin=cin, cin_pad=cin_pad)
        stats_ref[b, :, 0:1] = jnp.sum(acc, axis=1, keepdims=True)
        stats_ref[b, :, 1:2] = jnp.sum(acc * acc, axis=1, keepdims=True)


# ---------------------------------------------------------------------------
# Pass 2: recompute conv + folded BN affine + sigmoid (only big HBM write)
# ---------------------------------------------------------------------------
def _conv_bn_sig_kernel(x_ref, w_ref, scale_ref, shift_ref, o_ref,
                        slab_ref, taps_ref, *, width):
    bt, cin, hw = x_ref.shape
    halo = width + 1
    cin_pad = taps_ref.shape[0] // 9

    if cin_pad != cin:
        taps_ref[...] = jnp.zeros(taps_ref.shape, taps_ref.dtype)
    _fill_slab(x_ref, slab_ref, halo, hw)
    ok_left, ok_right = _column_masks(hw, width)
    w_mat = w_ref[...]
    scale = scale_ref[...]                                # (Cout, 1) gamma * rsqrt(var+eps)
    shift = shift_ref[...]                                # (Cout, 1) beta - mean*scale

    for b in range(bt):
        acc = _conv3x3_one(b, slab_ref, taps_ref, w_mat, ok_left, ok_right,
                           width=width, halo=halo, hw=hw, cin=cin, cin_pad=cin_pad)
        y = acc * scale + shift                           # single fused mul+add (BN folded)
        o_ref[b] = (1.0 / (1.0 + jnp.exp(-y))).astype(o_ref.dtype)   # sigmoid (EUP exp)


# ---------------------------------------------------------------------------
# Wrapper
# ---------------------------------------------------------------------------
def _pick_batch_tile(n, cin, cout, hw):
    """Batch elements per grid step: big enough for DMA efficiency, small enough for
    double-buffered VMEM, preferring >=2 grid steps so v7x's two TCs both get work."""
    per_elem_bytes = (cin + cout) * hw * 4
    target_bytes = 2 << 20
    bt = max(1, min(n, target_bytes // max(per_elem_bytes, 1)))
    if bt >= n and n >= 2:
        bt = (n + 1) // 2
    while n % bt:
        bt -= 1
    return int(bt)


def conv_bn_sig(x_nchw, w_oihw, gamma, beta, padding=1, eps=BN_EPS):
    """Pallas ConvBNSig.forward (ks=3, stride=1, pad=1). PyTorch NCHW/OIHW layouts."""
    n, cin, h, w = x_nchw.shape
    cout, cin_w, kh, kw = w_oihw.shape
    assert cin_w == cin and (kh, kw) == (3, 3) and padding == 1, \
        "kernel specialized to ks=3, stride=1, pad=1"
    hw = h * w
    halo = w + 1
    hwp = hw + 2 * halo
    cin_pad = -(-cin // 8) * 8                            # sublane-aligned tap stride

    # Free bitcast to the lane-dense flattened layout (H*W on lanes). No transposes,
    # no wrapper-side halo pad.
    x_flat = x_nchw.reshape(n, cin, hw)

    # (Cout, Cin, 3, 3) -> (Cout, 9*cin_pad) matching the in-kernel tap slab:
    # tap k = (dh+1)*3 + (dw+1) occupies K rows [k*cin_pad, k*cin_pad + cin).
    w_k = jnp.transpose(w_oihw, (0, 2, 3, 1)).astype(jnp.float32)   # (Cout, 3, 3, Cin)
    w_k = jnp.pad(w_k, ((0, 0), (0, 0), (0, 0), (0, cin_pad - cin)))
    w_mat = w_k.reshape(cout, 9 * cin_pad)

    bt = _pick_batch_tile(n, cin, cout, hw)
    grid = (n // bt,)

    params = pltpu.CompilerParams(
        dimension_semantics=("parallel",),                # shards grid over v7x's 2 TCs
        vmem_limit_bytes=32 * 1024 * 1024)                # explicit; safe on v5e/v6e/v7x

    scratch = [pltpu.VMEM((bt, cin, hwp), jnp.float32),       # zero-halo'd activation slab
               pltpu.VMEM((9 * cin_pad, hw), jnp.float32)]    # stacked K=9*cin_pad taps

    x_spec = pl.BlockSpec((bt, cin, hw), lambda i: (i, 0, 0))
    w_spec = pl.BlockSpec((cout, 9 * cin_pad), lambda i: (0, 0))

    # Pass 1: conv stays in VMEM; only the tiny per-batch channel stats hit HBM.
    stats = pl.pallas_call(
        functools.partial(_conv_stats_kernel, width=w),
        grid=grid,
        in_specs=[x_spec, w_spec],
        out_specs=pl.BlockSpec((bt, cout, 2), lambda i: (i, 0, 0)),
        out_shape=jax.ShapeDtypeStruct((n, cout, 2), jnp.float32),
        scratch_shapes=scratch,
        compiler_params=params,
    )(x_flat, w_mat)

    # Cout-length BN folding, hoisted out of the per-batch grid (trivial jnp).
    count = jnp.float32(n * hw)
    mean = jnp.sum(stats[:, :, 0], axis=0) / count
    var = jnp.maximum(jnp.sum(stats[:, :, 1], axis=0) / count - mean * mean, 0.0)
    scale = gamma.astype(jnp.float32) / jnp.sqrt(var + eps)     # biased (training) var
    shift = beta.astype(jnp.float32) - mean * scale
    scale = scale.reshape(cout, 1)
    shift = shift.reshape(cout, 1)

    # Pass 2: recompute the cheap conv, apply folded BN affine + sigmoid, write output.
    out_flat = pl.pallas_call(
        functools.partial(_conv_bn_sig_kernel, width=w),
        grid=grid,
        in_specs=[x_spec, w_spec,
                  pl.BlockSpec((cout, 1), lambda i: (0, 0)),
                  pl.BlockSpec((cout, 1), lambda i: (0, 0))],
        out_specs=pl.BlockSpec((bt, cout, hw), lambda i: (i, 0, 0)),
        out_shape=jax.ShapeDtypeStruct((n, cout, hw), x_nchw.dtype),
        scratch_shapes=scratch,
        compiler_params=params,
    )(x_flat, w_mat, scale, shift)

    return out_flat.reshape(n, cout, h, w)                # free bitcast back to NCHW


# ---------------------------------------------------------------------------
# Pure-JAX reference (mirrors the PyTorch forward with training-mode BN)
# ---------------------------------------------------------------------------
def reference_forward(x_nchw, w_oihw, gamma, beta, eps=BN_EPS):
    y = lax.conv_general_dilated(
        x_nchw, w_oihw, window_strides=(1, 1), padding=((1, 1), (1, 1)),
        dimension_numbers=("NCHW", "OIHW", "NCHW"))
    mean = jnp.mean(y, axis=(0, 2, 3), keepdims=True)
    var = jnp.mean((y - mean) ** 2, axis=(0, 2, 3), keepdims=True)
    yn = (y - mean) / jnp.sqrt(var + eps)
    yn = yn * gamma.reshape(1, -1, 1, 1) + beta.reshape(1, -1, 1, 1)
    return jax.nn.sigmoid(yn)


if __name__ == "__main__":
    key = jax.random.PRNGKey(0)
    kx, kw_key = jax.random.split(key)

    N, Cin, Cout, H, W, KS = 2, 4, 8, 16, 16, 3

    x = jax.random.normal(kx, (N, Cin, H, W), dtype=jnp.float32)

    # Conv2d weight: kaiming_normal_(a=1) => std = 1/sqrt(fan_in); bias=None.
    w_std = 1.0 / jnp.sqrt(jnp.float32(Cin * KS * KS))
    wgt = jax.random.normal(kw_key, (Cout, Cin, KS, KS), dtype=jnp.float32) * w_std

    # BatchNorm2d default init: weight (gamma) = 1, bias (beta) = 0.
    gamma = jnp.ones((Cout,), dtype=jnp.float32)
    beta = jnp.zeros((Cout,), dtype=jnp.float32)

    out = jax.block_until_ready(conv_bn_sig(x, wgt, gamma, beta))
    ref = jax.block_until_ready(reference_forward(x, wgt, gamma, beta))

    assert out.shape == (N, Cout, H, W), out.shape
    max_err = float(jnp.max(jnp.abs(out - ref)))
    assert jnp.allclose(out, ref, atol=1e-5, rtol=1e-5), max_err

    print("KERNEL_OK")
</pallas_src>

<mosaic_0001>
module attributes {stable_mosaic.version = 11 : i64} {
  func.func @_conv_stats_kernel(%arg0: i32, %arg1: memref<1x4x256xf32, #tpu.memory_space<vmem>>, %arg2: memref<8x72xf32, #tpu.memory_space<vmem>>, %arg3: memref<1x8x2xf32, #tpu.memory_space<vmem>>, %arg4: memref<1x4x290xf32, #tpu.memory_space<vmem>>, %arg5: memref<72x256xf32, #tpu.memory_space<vmem>>) attributes {dimension_semantics = [#tpu.dimension_semantics<parallel>], iteration_bounds = array<i64: 2>, scalar_prefetch = 0 : i64, scratch_operands = 2 : i64, tpu.core_type = #tpu.core_type<tc>, window_params = [{transform_indices = @transform_0, window_bounds = array<i64: 1, 4, 256>}, {pipeline_mode = #tpu.pipeline_mode<synchronous>, transform_indices = @transform_1, window_bounds = array<i64: 8, 72>}, {transform_indices = @transform_2, window_bounds = array<i64: 1, 8, 2>}]} {
    %cst = arith.constant 0.000000e+00 : f32
    %0 = vector.broadcast %cst : f32 to vector<72x256xf32>
    %c0 = arith.constant 0 : index
    %c0_0 = arith.constant 0 : index
    %1 = vector.load %arg5[%c0, %c0_0] : memref<72x256xf32, #tpu.memory_space<vmem>>, vector<72x256xf32>
    tpu.vector_store %arg5[%c0, %c0_0], %0 {strides = array<i32>} : memref<72x256xf32, #tpu.memory_space<vmem>>, vector<72x256xf32>,
    %cst_1 = arith.constant 0.000000e+00 : f32
    %2 = vector.broadcast %cst_1 : f32 to vector<1x4x290xf32>
    %c0_2 = arith.constant 0 : index
    %c0_3 = arith.constant 0 : index
    %c0_4 = arith.constant 0 : index
    %3 = vector.load %arg4[%c0_2, %c0_3, %c0_4] : memref<1x4x290xf32, #tpu.memory_space<vmem>>, vector<1x4x290xf32>
    tpu.vector_store %arg4[%c0_2, %c0_3, %c0_4], %2 {strides = array<i32>} : memref<1x4x290xf32, #tpu.memory_space<vmem>>, vector<1x4x290xf32>,
    %c0_5 = arith.constant 0 : index
    %c0_6 = arith.constant 0 : index
    %c0_7 = arith.constant 0 : index
    %4 = vector.load %arg1[%c0_5, %c0_6, %c0_7] : memref<1x4x256xf32, #tpu.memory_space<vmem>>, vector<1x4x256xf32>
    %c0_8 = arith.constant 0 : index
    %c0_9 = arith.constant 0 : index
    %c17 = arith.constant 17 : index
    %5 = vector.load %arg4[%c0_8, %c0_9, %c17] : memref<1x4x290xf32, #tpu.memory_space<vmem>>, vector<1x4x256xf32>
    tpu.vector_store %arg4[%c0_8, %c0_9, %c17], %4 {strides = array<i32>} : memref<1x4x290xf32, #tpu.memory_space<vmem>>, vector<1x4x256xf32>,
    %6 = tpu.iota {dimensions = array<i32: 1>} : vector<1x256xi32>
    %c16_i32 = arith.constant 16 : i32
    %7 = vector.broadcast %c16_i32 : i32 to vector<1x256xi32>
    %8 = arith.remsi %6, %7 : vector<1x256xi32>
    %c0_i32 = arith.constant 0 : i32
    %9 = vector.broadcast %c0_i32 : i32 to vector<1x256xi32>
    %10 = arith.cmpi ne, %8, %9 : vector<1x256xi32>
    %c15_i32 = arith.constant 15 : i32
    %11 = vector.broadcast %c15_i32 : i32 to vector<1x256xi32>
    %12 = arith.cmpi ne, %8, %11 : vector<1x256xi32>
    %c0_10 = arith.constant 0 : index
    %c0_11 = arith.constant 0 : index
    %13 = vector.load %arg2[%c0_10, %c0_11] : memref<8x72xf32, #tpu.memory_space<vmem>>, vector<8x72xf32>
    %c0_12 = arith.constant 0 : index
    %c0_13 = arith.constant 0 : index
    %c0_14 = arith.constant 0 : index
    %14 = vector.load %arg4[%c0_12, %c0_13, %c0_14] : memref<1x4x290xf32, #tpu.memory_space<vmem>>, vector<1x4x256xf32>
    %15 = vector.shape_cast %14 : vector<1x4x256xf32> to vector<4x256xf32>
    %cst_15 = arith.constant 0.000000e+00 : f32
    %16 = vector.shape_cast %10 : vector<1x256xi1> to vector<1x256xi1>
    %17 = vector.broadcast %16 : vector<1x256xi1> to vector<4x256xi1>
    %18 = vector.broadcast %cst_15 : f32 to vector<4x256xf32>
    %19 = arith.select %17, %15, %18 : vector<4x256xi1>, vector<4x256xf32>
    %c0_16 = arith.constant 0 : index
    %c0_17 = arith.constant 0 : index
    %20 = vector.load %arg5[%c0_16, %c0_17] : memref<72x256xf32, #tpu.memory_space<vmem>>, vector<4x256xf32>
    tpu.vector_store %arg5[%c0_16, %c0_17], %19 {strides = array<i32>} : memref<72x256xf32, #tpu.memory_space<vmem>>, vector<4x256xf32>,
    %c0_18 = arith.constant 0 : index
    %c0_19 = arith.constant 0 : index
    %c1 = arith.constant 1 : index
    %21 = vector.load %arg4[%c0_18, %c0_19, %c1] : memref<1x4x290xf32, #tpu.memory_space<vmem>>, vector<1x4x256xf32>
    %22 = vector.shape_cast %21 : vector<1x4x256xf32> to vector<4x256xf32>
    %c8 = arith.constant 8 : index
    %c0_20 = arith.constant 0 : index
    %23 = vector.load %arg5[%c8, %c0_20] : memref<72x256xf32, #tpu.memory_space<vmem>>, vector<4x256xf32>
    tpu.vector_store %arg5[%c8, %c0_20], %22 {strides = array<i32>} : memref<72x256xf32, #tpu.memory_space<vmem>>, vector<4x256xf32>,
    %c0_21 = arith.constant 0 : index
    %c0_22 = arith.constant 0 : index
    %c2 = arith.constant 2 : index
    %24 = vector.load %arg4[%c0_21, %c0_22, %c2] : memref<1x4x290xf32, #tpu.memory_space<vmem>>, vector<1x4x256xf32>
    %25 = vector.shape_cast %24 : vector<1x4x256xf32> to vector<4x256xf32>
    %cst_23 = arith.constant 0.000000e+00 : f32
    %26 = vector.shape_cast %12 : vector<1x256xi1> to vector<1x256xi1>
    %27 = vector.broadcast %26 : vector<1x256xi1> to vector<4x256xi1>
    %28 = vector.broadcast %cst_23 : f32 to vector<4x256xf32>
    %29 = arith.select %27, %25, %28 : vector<4x256xi1>, vector<4x256xf32>
    %c16 = arith.constant 16 : index
    %c0_24 = arith.constant 0 : index
    %30 = vector.load %arg5[%c16, %c0_24] : memref<72x256xf32, #tpu.memory_space<vmem>>, vector<4x256xf32>
    tpu.vector_store %arg5[%c16, %c0_24], %29 {strides = array<i32>} : memref<72x256xf32, #tpu.memory_space<vmem>>, vector<4x256xf32>,
    %c0_25 = arith.constant 0 : index
    %c0_26 = arith.constant 0 : index
    %c16_27 = arith.constant 16 : index
    %31 = vector.load %arg4[%c0_25, %c0_26, %c16_27] : memref<1x4x290xf32, #tpu.memory_space<vmem>>, vector<1x4x256xf32>
    %32 = vector.shape_cast %31 : vector<1x4x256xf32> to vector<4x256xf32>
    %cst_28 = arith.constant 0.000000e+00 : f32
    %33 = vector.shape_cast %10 : vector<1x256xi1> to vector<1x256xi1>
    %34 = vector.broadcast %33 : vector<1x256xi1> to vector<4x256xi1>
    %35 = vector.broadcast %cst_28 : f32 to vector<4x256xf32>
    %36 = arith.select %34, %32, %35 : vector<4x256xi1>, vector<4x256xf32>
    %c24 = arith.constant 24 : index
    %c0_29 = arith.constant 0 : index
    %37 = vector.load %arg5[%c24, %c0_29] : memref<72x256xf32, #tpu.memory_space<vmem>>, vector<4x256xf32>
    tpu.vector_store %arg5[%c24, %c0_29], %36 {strides = array<i32>} : memref<72x256xf32, #tpu.memory_space<vmem>>, vector<4x256xf32>,
    %c0_30 = arith.constant 0 : index
    %c0_31 = arith.constant 0 : index
    %c17_32 = arith.constant 17 : index
    %38 = vector.load %arg4[%c0_30, %c0_31, %c17_32] : memref<1x4x290xf32, #tpu.memory_space<vmem>>, vector<1x4x256xf32>
    %39 = vector.shape_cast %38 : vector<1x4x256xf32> to vector<4x256xf32>
    %c32 = arith.constant 32 : index
    %c0_33 = arith.constant 0 : index
    %40 = vector.load %arg5[%c32, %c0_33] : memref<72x256xf32, #tpu.memory_space<vmem>>, vector<4x256xf32>
    tpu.vector_store %arg5[%c32, %c0_33], %39 {strides = array<i32>} : memref<72x256xf32, #tpu.memory_space<vmem>>, vector<4x256xf32>,
    %c0_34 = arith.constant 0 : index
    %c0_35 = arith.constant 0 : index
    %c18 = arith.constant 18 : index
    %41 = vector.load %arg4[%c0_34, %c0_35, %c18] : memref<1x4x290xf32, #tpu.memory_space<vmem>>, vector<1x4x256xf32>
    %42 = vector.shape_cast %41 : vector<1x4x256xf32> to vector<4x256xf32>
    %cst_36 = arith.constant 0.000000e+00 : f32
    %43 = vector.shape_cast %12 : vector<1x256xi1> to vector<1x256xi1>
    %44 = vector.broadcast %43 : vector<1x256xi1> to vector<4x256xi1>
    %45 = vector.broadcast %cst_36 : f32 to vector<4x256xf32>
    %46 = arith.select %44, %42, %45 : vector<4x256xi1>, vector<4x256xf32>
    %c40 = arith.constant 40 : index
    %c0_37 = arith.constant 0 : index
    %47 = vector.load %arg5[%c40, %c0_37] : memref<72x256xf32, #tpu.memory_space<vmem>>, vector<4x256xf32>
    tpu.vector_store %arg5[%c40, %c0_37], %46 {strides = array<i32>} : memref<72x256xf32, #tpu.memory_space<vmem>>, vector<4x256xf32>,
    %c0_38 = arith.constant 0 : index
    %c0_39 = arith.constant 0 : index
    %c32_40 = arith.constant 32 : index
    %48 = vector.load %arg4[%c0_38, %c0_39, %c32_40] : memref<1x4x290xf32, #tpu.memory_space<vmem>>, vector<1x4x256xf32>
    %49 = vector.shape_cast %48 : vector<1x4x256xf32> to vector<4x256xf32>
    %cst_41 = arith.constant 0.000000e+00 : f32
    %50 = vector.shape_cast %10 : vector<1x256xi1> to vector<1x256xi1>
    %51 = vector.broadcast %50 : vector<1x256xi1> to vector<4x256xi1>
    %52 = vector.broadcast %cst_41 : f32 to vector<4x256xf32>
    %53 = arith.select %51, %49, %52 : vector<4x256xi1>, vector<4x256xf32>
    %c48 = arith.constant 48 : index
    %c0_42 = arith.constant 0 : index
    %54 = vector.load %arg5[%c48, %c0_42] : memref<72x256xf32, #tpu.memory_space<vmem>>, vector<4x256xf32>
    tpu.vector_store %arg5[%c48, %c0_42], %53 {strides = array<i32>} : memref<72x256xf32, #tpu.memory_space<vmem>>, vector<4x256xf32>,
    %c0_43 = arith.constant 0 : index
    %c0_44 = arith.constant 0 : index
    %c33 = arith.constant 33 : index
    %55 = vector.load %arg4[%c0_43, %c0_44, %c33] : memref<1x4x290xf32, #tpu.memory_space<vmem>>, vector<1x4x256xf32>
    %56 = vector.shape_cast %55 : vector<1x4x256xf32> to vector<4x256xf32>
    %c56 = arith.constant 56 : index
    %c0_45 = arith.constant 0 : index
    %57 = vector.load %arg5[%c56, %c0_45] : memref<72x256xf32, #tpu.memory_space<vmem>>, vector<4x256xf32>
    tpu.vector_store %arg5[%c56, %c0_45], %56 {strides = array<i32>} : memref<72x256xf32, #tpu.memory_space<vmem>>, vector<4x256xf32>,
    %c0_46 = arith.constant 0 : index
    %c0_47 = arith.constant 0 : index
    %c34 = arith.constant 34 : index
    %58 = vector.load %arg4[%c0_46, %c0_47, %c34] : memref<1x4x290xf32, #tpu.memory_space<vmem>>, vector<1x4x256xf32>
    %59 = vector.shape_cast %58 : vector<1x4x256xf32> to vector<4x256xf32>
    %cst_48 = arith.constant 0.000000e+00 : f32
    %60 = vector.shape_cast %12 : vector<1x256xi1> to vector<1x256xi1>
    %61 = vector.broadcast %60 : vector<1x256xi1> to vector<4x256xi1>
    %62 = vector.broadcast %cst_48 : f32 to vector<4x256xf32>
    %63 = arith.select %61, %59, %62 : vector<4x256xi1>, vector<4x256xf32>
    %c64 = arith.constant 64 : index
    %c0_49 = arith.constant 0 : index
    %64 = vector.load %arg5[%c64, %c0_49] : memref<72x256xf32, #tpu.memory_space<vmem>>, vector<4x256xf32>
    tpu.vector_store %arg5[%c64, %c0_49], %63 {strides = array<i32>} : memref<72x256xf32, #tpu.memory_space<vmem>>, vector<4x256xf32>,
    %c0_50 = arith.constant 0 : index
    %c0_51 = arith.constant 0 : index
    %65 = vector.load %arg5[%c0_50, %c0_51] : memref<72x256xf32, #tpu.memory_space<vmem>>, vector<72x256xf32>
    %cst_52 = arith.constant dense<0.000000e+00> : vector<8x256xf32>
    %66 = tpu.matmul %13, %65, %cst_52 {dimension_numbers = #tpu.dot_dimension_numbers<[1], [0], [0], [1], [0, 0, 1, 1], [], []>} : vector<8x72xf32>, vector<72x256xf32>, vector<8x256xf32> -> vector<8x256xf32>
    %cst_53 = arith.constant dense<0.000000e+00> : vector<8xf32>
    %67 = vector.multi_reduction <add>, %66, %cst_53 [1] : vector<8x256xf32> to vector<8xf32>
    %68 = vector.shape_cast %67 : vector<8xf32> to vector<8x1xf32>
    %c0_54 = arith.constant 0 : index
    %c0_55 = arith.constant 0 : index
    %c0_56 = arith.constant 0 : index
    %69 = vector.load %arg3[%c0_54, %c0_55, %c0_56] : memref<1x8x2xf32, #tpu.memory_space<vmem>>, vector<1x8x1xf32>
    %70 = vector.shape_cast %69 : vector<1x8x1xf32> to vector<8x1xf32>
    %71 = vector.shape_cast %68 : vector<8x1xf32> to vector<1x8x1xf32>
    tpu.vector_store %arg3[%c0_54, %c0_55, %c0_56], %71 {strides = array<i32>} : memref<1x8x2xf32, #tpu.memory_space<vmem>>, vector<1x8x1xf32>,
    %72 = arith.mulf %66, %66 : vector<8x256xf32>
    %cst_57 = arith.constant dense<0.000000e+00> : vector<8xf32>
    %73 = vector.multi_reduction <add>, %72, %cst_57 [1] : vector<8x256xf32> to vector<8xf32>
    %74 = vector.shape_cast %73 : vector<8xf32> to vector<8x1xf32>
    %c0_58 = arith.constant 0 : index
    %c0_59 = arith.constant 0 : index
    %c1_60 = arith.constant 1 : index
    %75 = vector.load %arg3[%c0_58, %c0_59, %c1_60] : memref<1x8x2xf32, #tpu.memory_space<vmem>>, vector<1x8x1xf32>
    %76 = vector.shape_cast %75 : vector<1x8x1xf32> to vector<8x1xf32>
    %77 = vector.shape_cast %74 : vector<8x1xf32> to vector<1x8x1xf32>
    tpu.vector_store %arg3[%c0_58, %c0_59, %c1_60], %77 {strides = array<i32>} : memref<1x8x2xf32, #tpu.memory_space<vmem>>, vector<1x8x1xf32>,
    return
  }
  func.func @transform_0(%arg0: i32) -> (i32, i32, i32) {
    %c0_i32 = arith.constant 0 : i32
    %c0_i32_0 = arith.constant 0 : i32
    %c0_i32_1 = arith.constant 0 : i32
    return %arg0, %c0_i32, %c0_i32_0 : i32, i32, i32
  }
  func.func @transform_1(%arg0: i32) -> (i32, i32) {
    %c0_i32 = arith.constant 0 : i32
    %c0_i32_0 = arith.constant 0 : i32
    %c0_i32_1 = arith.constant 0 : i32
    return %c0_i32, %c0_i32_0 : i32, i32
  }
  func.func @transform_2(%arg0: i32) -> (i32, i32, i32) {
    %c0_i32 = arith.constant 0 : i32
    %c0_i32_0 = arith.constant 0 : i32
    %c0_i32_1 = arith.constant 0 : i32
    return %arg0, %c0_i32, %c0_i32_0 : i32, i32, i32
  }
}

</mosaic_0001>

<llo_original>
// kernel: tpu_custom_call.1
$region0: #{tpu_custom_call.1}
  #allocation0 [shape = 'u32[]', space=smem, size = 0x4, offset = 0x4, fixed_abs, tag = 'smem constant byte address 0x4 - core index']
  #allocation1 [shape = 'u32[72,128]{1,0:T(1,128)}', space=vmem, size = 0x9000, scoped, tag = 'internal scratch']
  #allocation2 [shape = 'f32[1,4,290]{2,1,0:T(4,128)}', space=vmem, size = 0x1800, scoped, tag = 'scratch operand']
  #allocation3 [shape = 'f32[72,256]{1,0:T(8,128)}', space=vmem, size = 0x12000, scoped, tag = 'scratch operand']
  %s0 = inlined_call_operand.hbm [shape: f32[2,4,256], index: 0, kind: input, shape index: {}]
  %s1 = inlined_call_operand.hbm [shape: f32[8,72], index: 1, kind: input, shape index: {}]
  %s2 = inlined_call_operand.vmem [shape: f32[2,8,2], index: 2, kind: output, shape index: {}]
  %s3 = sld [smem:[#allocation0]]
  $region49: #{tpu_custom_call.1} parent=0
    _
  %s5 = ssub.s32 1, %s3
  %s6 = scalar_select 0, %s5, %s3
  $region1: #{tpu_custom_call.1} parent=0
    #allocation4 [shape = 'u8[8192]{0}', space=vmem, size = 0x2000, scoped, tag = 'input window, operand 0']
    #allocation5 [shape = 's32[2]{0}', space=sflag, size = 0x8, scoped, tag = 'scoped memory for tpu_custom_call.1']
    #allocation6 [shape = 'u8[4096]{0}', space=vmem, size = 0x1000, scoped, tag = 'input window, operand 1, single buffered']
    #allocation7 [shape = 's32[1]{0}', space=sflag, size = 0x4, scoped, tag = 'scoped memory for tpu_custom_call.1']
    %7 = vsyncpa [#allocation5], 0
    %s8 = scalar_lea.sflag [#allocation5], 1
    %9 = vsyncpa %s8, 0
    %10 = vsyncpa [#allocation7], 0
    loop: start=0, step=1, limit=4
    $region2: #{tpu_custom_call.1} parent=1 // loop_pre_header
      _
    $region3: #{tpu_custom_call.1} parent=1 // loop_header
      %s12 = sphi 0, %s16
      %p13 = scmp.ge.s32.totalorder %s12, 4
      %s22 = sphi 0, %s24
      %s25 = sphi 0, %s22
      %s26 = sphi 0, %s25
      %s42 = sphi 0, %s26
      %s46 = sphi 0, %s46
      %s48 = sphi 0, %s46
      %s49 = sphi 0, %s48
      %s63 = sphi 0, %s49
      %s69 = sphi 0, %s71
      %s72 = sphi 0, %s69
      %s73 = sphi 0, %s72
      %s89 = sphi 0, %s73
    $region4: #{tpu_custom_call.1} parent=1 // loop_header_branch
      %15 = sbr.rel (%p13) target = $region8
    $region5: #{tpu_custom_call.1} parent=1 // loop_body
      %s17 = ssub.s32 %s12, 1
      %s18 = ssub.s32 %s12, 2
      %s19 = sadd.s32 %s12, 1
      %s20 = ssub.s32 %s12, %s19
      %p21 = scmp.eq.s32.totalorder %s20, 0
      %s23 = sadd.s32 %s22, 1
      %s24 = scalar_select %p21, %s22, %s23
      %p27 = pneg %p21
      %p28 = scmp.eq.s32.totalorder %s12, 1
      %p29 = por %p27, %p28
      %p30 = scmp.ne.s32.totalorder %s22, %s25
      %p31 = scmp.eq.s32.totalorder %s12, 0
      %p32 = por %p30, %p31
      %p33 = scmp.ne.s32.totalorder %s22, %s25
      %p34 = scmp.eq.s32.totalorder %s17, 1
      %p35 = por %p33, %p34
      %p36 = scmp.ne.s32.totalorder %s25, %s26
      %p37 = scmp.eq.s32.totalorder %s17, 0
      %p38 = por %p36, %p37
      %p39 = scmp.ne.s32.totalorder %s25, %s26
      %p40 = scmp.eq.s32.totalorder %s18, 1
      %p41 = por %p39, %p40
      %p43 = scmp.ne.s32.totalorder %s26, %s42
      %p44 = scmp.eq.s32.totalorder %s18, 0
      %p45 = por %p43, %p44
      %s47 = sadd.s32 %s46, 1
      %p50 = scmp.eq.s32.totalorder %s12, 1
      %p51 = scmp.ne.s32.totalorder %s46, %s48
      %p52 = scmp.eq.s32.totalorder %s12, 0
      %p53 = por %p51, %p52
      %p54 = scmp.ne.s32.totalorder %s46, %s48
      %p55 = scmp.eq.s32.totalorder %s17, 1
      %p56 = por %p54, %p55
      %p57 = scmp.ne.s32.totalorder %s48, %s49
      %p58 = scmp.eq.s32.totalorder %s17, 0
      %p59 = por %p57, %p58
      %p60 = scmp.ne.s32.totalorder %s48, %s49
      %p61 = scmp.eq.s32.totalorder %s18, 1
      %p62 = por %p60, %p61
      %p64 = scmp.ne.s32.totalorder %s49, %s63
      %p65 = scmp.eq.s32.totalorder %s18, 0
      %p66 = por %p64, %p65
      %s67 = ssub.s32 %s12, %s19
      %p68 = scmp.eq.s32.totalorder %s67, 0
      %s70 = sadd.s32 %s69, 1
      %s71 = scalar_select %p68, %s69, %s70
      %p74 = pneg %p68
      %p75 = scmp.eq.s32.totalorder %s12, 1
      %p76 = por %p74, %p75
      %p77 = scmp.ne.s32.totalorder %s69, %s72
      %p78 = scmp.eq.s32.totalorder %s12, 0
      %p79 = por %p77, %p78
      %p80 = scmp.ne.s32.totalorder %s69, %s72
      %p81 = scmp.eq.s32.totalorder %s17, 1
      %p82 = por %p80, %p81
      %p83 = scmp.ne.s32.totalorder %s72, %s73
      %p84 = scmp.eq.s32.totalorder %s17, 0
      %p85 = por %p83, %p84
      %p86 = scmp.ne.s32.totalorder %s72, %s73
      %p87 = scmp.eq.s32.totalorder %s18, 1
      %p88 = por %p86, %p87
      %p90 = scmp.ne.s32.totalorder %s73, %s89
      %p91 = scmp.eq.s32.totalorder %s18, 0
      %p92 = por %p90, %p91
      %p93 = scmp.le.s32.totalorder 1, %s12
      %p94 = scmp.lt.s32.totalorder %s12, 3
      %p95 = pnand %p93, %p94
      %p96 = pneg %p95
      // Predicated region
      $region9: #{tpu_custom_call.1} parent=5 // pred_check
        _
      $region10: #{tpu_custom_call.1} parent=5 // pred_check_branch
        %98 = sbr.rel (%p95) target = $region12
      $region11: #{tpu_custom_call.1} parent=5 // pred_region
        %s99 = ssub.s32 %s12, 1
        // Predicated region
        $region13: #{tpu_custom_call.1} parent=11 // pred_check
          %p100 = pneg %p59
        $region14: #{tpu_custom_call.1} parent=11 // pred_check_branch
          %102 = sbr.rel (%p100) target = $region16
        $region15: #{tpu_custom_call.1} parent=11 // pred_region
          %104 = vsyncadd [#allocation7], 0
          %s106 = sshll.u32 %s1, 4
          %s107 = int_to_ptr.hbm [resolvable:$true] %s106
          %s108 = sshll.u32 [#allocation6], 4
          %s109 = int_to_ptr.vmem [resolvable:$true] %s108
          %111 = dma.hbm_to_vmem [thread:$0]  %s107, 128, %s109, [#allocation7]
        $region16: #{tpu_custom_call.1} parent=11 // pred_fallthru
          _
      $region12: #{tpu_custom_call.1} parent=5 // pred_fallthru
        _
      %p112 = scmp.lt.s32.totalorder %s12, 2
      // Predicated region
      $region17: #{tpu_custom_call.1} parent=5 // pred_check
        %p113 = pneg %p112
      $region18: #{tpu_custom_call.1} parent=5 // pred_check_branch
        %115 = sbr.rel (%p113) target = $region20
      $region19: #{tpu_custom_call.1} parent=5 // pred_region
        // Predicated region
        $region21: #{tpu_custom_call.1} parent=19 // pred_check
          %p116 = pneg %p32
        $region22: #{tpu_custom_call.1} parent=19 // pred_check_branch
          %118 = sbr.rel (%p116) target = $region24
        $region23: #{tpu_custom_call.1} parent=19 // pred_region
          %s119 = sand.u32 %s22, 1
          %s120 = scalar_lea.sflag [#allocation5], %s119
          %s121 = sand.u32 %s22, 1
          %s122 = smul.addr %s121, 8
          %s123 = scalar_lea.vmem [#allocation4], %s122
          %125 = vsyncadd %s120, 0
          %s126 = smul.addr %s12, 2
          %s127 = smul.addr %s126, 4
          %s128 = scalar_lea.hbm %s0, %s127
          %s130 = sshll.u32 %s128, 4
          %s131 = int_to_ptr.hbm [resolvable:$true] %s130
          %s132 = sshll.u32 %s123, 4
          %s133 = int_to_ptr.vmem [resolvable:$true] %s132
          %135 = dma.hbm_to_vmem [thread:$0]  %s131, 128, %s133, %s120
        $region24: #{tpu_custom_call.1} parent=19 // pred_fallthru
          _
      $region20: #{tpu_custom_call.1} parent=5 // pred_fallthru
        _
      %p136 = scmp.le.s32.totalorder 1, %s12
      %p137 = scmp.lt.s32.totalorder %s12, 3
      %p138 = pnand %p136, %p137
      %p139 = pneg %p138
      // Predicated region
      $region25: #{tpu_custom_call.1} parent=5 // pred_check
        _
      $region26: #{tpu_custom_call.1} parent=5 // pred_check_branch
        %141 = sbr.rel (%p138) target = $region28
      $region27: #{tpu_custom_call.1} parent=5 // pred_region
        %s142 = ssub.s32 %s12, 1
        %s143 = sand.u32 %s25, 1
        %s144 = scalar_lea.sflag [#allocation5], %s143
        %s145 = sand.u32 %s25, 1
        %s146 = smul.addr %s145, 8
        %s147 = scalar_lea.vmem [#allocation4], %s146
        // Predicated region
        $region29: #{tpu_custom_call.1} parent=27 // pred_check
          %p148 = pneg %p38
        $region30: #{tpu_custom_call.1} parent=27 // pred_check_branch
          %150 = sbr.rel (%p148) target = $region32
        $region31: #{tpu_custom_call.1} parent=27 // pred_region
          %152 = dma.done %s144, 128
        $region32: #{tpu_custom_call.1} parent=27 // pred_fallthru
          _
        // Predicated region
        $region33: #{tpu_custom_call.1} parent=27 // pred_check
          %p153 = pneg %p59
        $region34: #{tpu_custom_call.1} parent=27 // pred_check_branch
          %155 = sbr.rel (%p153) target = $region36
        $region35: #{tpu_custom_call.1} parent=27 // pred_region
          %157 = dma.done [#allocation7], 128
        $region36: #{tpu_custom_call.1} parent=27 // pred_fallthru
          _
        %s158 = sand.u32 %s25, 1
        %s159 = scalar_lea.sflag [#allocation5], %s158
        %s160 = sand.u32 %s25, 1
        %s161 = smul.addr %s160, 8
        %s162 = scalar_lea.vmem [#allocation4], %s161
        %p163 = pneg %p38
        %p164 = pneg %p35
        %p165 = pneg %p59
        %p166 = pneg %p56
        %p167 = pneg %p85
        %p168 = pneg %p82
        %p169 = scmp.lt.s32.totalorder %s17, 1
        %s170 = scalar_select %p169, %s17, 1
        %s171 = smul.addr %s170, 8
        %s172 = scalar_lea.vmem %s2, %s171
        %p173 = scmp.lt.s32.totalorder %s17, 1
        %s174 = scalar_select %p173, %s17, 1
        %s175 = smul.addr %s174, 8
        %s176 = scalar_lea.vmem %s2, %s175
        %177 = vst [vmem:[#allocation3] sm:$0xff] 0.0
        %178 = vst [vmem:[#allocation3 + $0x8] sm:$0xff] 0.0
        %179 = vst [vmem:[#allocation3 + $0x10] sm:$0xff] 0.0
        %180 = vst [vmem:[#allocation3 + $0x18] sm:$0xff] 0.0
        %181 = vst [vmem:[#allocation3 + $0x20] sm:$0xff] 0.0
        %182 = vst [vmem:[#allocation3 + $0x28] sm:$0xff] 0.0
        %183 = vst [vmem:[#allocation3 + $0x30] sm:$0xff] 0.0
        %184 = vst [vmem:[#allocation3 + $0x38] sm:$0xff] 0.0
        %185 = vst [vmem:[#allocation3 + $0x40] sm:$0xff] 0.0
        %186 = vst [vmem:[#allocation3 + $0x48] sm:$0xff] 0.0
        %187 = vst [vmem:[#allocation3 + $0x50] sm:$0xff] 0.0
        %188 = vst [vmem:[#allocation3 + $0x58] sm:$0xff] 0.0
        %189 = vst [vmem:[#allocation3 + $0x60] sm:$0xff] 0.0
        %190 = vst [vmem:[#allocation3 + $0x68] sm:$0xff] 0.0
        %191 = vst [vmem:[#allocation3 + $0x70] sm:$0xff] 0.0
        %192 = vst [vmem:[#allocation3 + $0x78] sm:$0xff] 0.0
        %193 = vst [vmem:[#allocation3 + $0x80] sm:$0xff] 0.0
        %194 = vst [vmem:[#allocation3 + $0x88] sm:$0xff] 0.0
        %195 = vst [vmem:[#allocation2] sm:$0xff] 0.0
        %vm196 = vcmask 273408
        %197 = vst.msk [vmem:[#allocation2 + $0x8] sm:$0xf] %vm196, 0.0
        %v198 = vld [vmem:[%s147] sm:$0xff]
        %200 = vrot.lane.b32.xlu0 %v198, 17
        %v201 = vpop.permute.xlu0 %200
        %v202 = vrot.slane %v201, 4
        %vm203 = vcmask 138240
        %v204 = vsel %vm203, %v202, %v201
        %vm207 = vcmask 1043592
        %vm208 = vcmask 1047556
        %vm209 = vmor %vm208, %vm207
        %210 = vst.msk [vmem:[#allocation2] sm:$0xff] %vm209, %v204
        %vm211 = vcmask 134144
        %212 = vst.msk [vmem:[#allocation2 + $0x8] sm:$0xf] %vm211, %v202
        %v213 = vlaneseq
        %v214 = vand.u32 %v213, 127
        %v215 = vadd.s32 %v214, 128
        %vm216 = vcmp.lt.s32.totalorder %v214, 0
        %v217 = vsub.s32 0, %v214
        %v218 = vsel %vm216, %v217, %v214
        %v219 = vshrl.u32 %v218, 4
        %v220 = vand.u32 %v218, 15
        %v221 = vsub.s32 0, %v220
        %v222 = vsel %vm216, %v221, %v220
        %vm223 = vcmp.lt.s32.totalorder %v215, 0
        %v224 = vsub.s32 0, %v215
        %v225 = vsel %vm223, %v224, %v215
        %v226 = vshrl.u32 %v225, 4
        %v227 = vand.u32 %v225, 15
        %v228 = vsub.s32 0, %v227
        %v229 = vsel %vm223, %v228, %v227
        %vm230 = vcmp.ne.s32.totalorder %v222, 0
        %vm231 = vcmp.ne.s32.totalorder %v229, 0
        %vm232 = vcmp.ne.s32.totalorder %v222, 15
        %vm233 = vcmp.ne.s32.totalorder %v229, 15
        %v234 = vld [vmem:[#allocation6] sm:$0xff]
        %v235 = vld [vmem:[#allocation2] sm:$0xff]
        %v236 = vsel %vm230, 1, 0
        %v237 = vsel %vm231, 1, 0
        %vm238 = vcmp.eq.s32.totalorder %v236, 1
        %vm239 = vcmp.eq.s32.totalorder %v237, 1
        %241 = vst [vmem:[#allocation1] ss:$2 sm:$0xff] %v235
        %v242 = vld.sshfl [vmem:[#allocation1] sm:$0xff pattern:$0x75316420]
        %v243 = vld.sshfl [vmem:[#allocation1 + $0x8] sm:$0xff pattern:$0x75316420]
        %v246 = vsel %vm238, %v242, 0.0
        %v247 = vsel %vm239, %v243, 0.0
        %248 = vst [vmem:[#allocation3] sm:$0xf] %v246
        %249 = vst [vmem:[#allocation3 + $0x8] sm:$0xf] %v247
        %v250 = vld [vmem:[#allocation2] sm:$0xff]
        %v251 = vld [vmem:[#allocation2 + $0x8] sm:$0xf]
        %254 = vst [vmem:[#allocation1] ss:$2 sm:$0xff] %v250
        %s255 = scalar_lea.vmem [#allocation1], 16
        %256 = vst [vmem:[%s255] ss:$2 sm:$0xff] %v251
        %v257 = vld.sshfl [vmem:[#allocation1] sm:$0xff pattern:$0x75316420]
        %v258 = vld.sshfl [vmem:[#allocation1 + $0x8] sm:$0xff pattern:$0x75316420]
        %v259 = vld.sshfl [vmem:[#allocation1 + $0x10] sm:$0xff pattern:$0x75316420]
        %260 = vrot.lane.b32.xlu0 %v257, 127
        %v261 = vpop.permute.xlu0 %260
        %262 = vrot.lane.b32.xlu0 %v258, 127
        %v263 = vpop.permute.xlu0 %262
        %264 = vrot.lane.b32.xlu0 %v259, 127
        %v265 = vpop.permute.xlu0 %264
        %vm266 = vcmask 1039360
        %v267 = vsel %vm266, %v261, %v263
        %v268 = vsel %vm266, %v263, %v265
        %271 = vst [vmem:[#allocation3 + $0x10] sm:$0xf] %v267
        %272 = vst [vmem:[#allocation3 + $0x18] sm:$0xf] %v268
        %v273 = vld [vmem:[#allocation2] sm:$0xff]
        %v274 = vld [vmem:[#allocation2 + $0x8] sm:$0xf]
        %v275 = vsel %vm232, 1, 0
        %v276 = vsel %vm233, 1, 0
        %vm277 = vcmp.eq.s32.totalorder %v275, 1
        %vm278 = vcmp.eq.s32.totalorder %v276, 1
        %281 = vst [vmem:[#allocation1] ss:$2 sm:$0xff] %v273
        %s282 = scalar_lea.vmem [#allocation1], 16
        %283 = vst [vmem:[%s282] ss:$2 sm:$0xff] %v274
        %v284 = vld.sshfl [vmem:[#allocation1] sm:$0xff pattern:$0x75316420]
        %v285 = vld.sshfl [vmem:[#allocation1 + $0x8] sm:$0xff pattern:$0x75316420]
        %v286 = vld.sshfl [vmem:[#allocation1 + $0x10] sm:$0xff pattern:$0x75316420]
        %287 = vrot.lane.b32.xlu0 %v284, 126
        %v288 = vpop.permute.xlu0 %287
        %289 = vrot.lane.b32.xlu0 %v285, 126
        %v290 = vpop.permute.xlu0 %289
        %291 = vrot.lane.b32.xlu0 %v286, 126
        %v292 = vpop.permute.xlu0 %291
        %vm293 = vcmask 1031168
        %v294 = vsel %vm293, %v288, %v290
        %v295 = vsel %vm293, %v290, %v292
        %v298 = vsel %vm277, %v294, 0.0
        %v299 = vsel %vm278, %v295, 0.0
        %300 = vst [vmem:[#allocation3 + $0x20] sm:$0xf] %v298
        %301 = vst [vmem:[#allocation3 + $0x28] sm:$0xf] %v299
        %v302 = vld [vmem:[#allocation2] sm:$0xff]
        %v303 = vld [vmem:[#allocation2 + $0x8] sm:$0xf]
        %306 = vst [vmem:[#allocation1] ss:$2 sm:$0xff] %v302
        %s307 = scalar_lea.vmem [#allocation1], 16
        %308 = vst [vmem:[%s307] ss:$2 sm:$0xff] %v303
        %v309 = vld.sshfl [vmem:[#allocation1] sm:$0xff pattern:$0x75316420]
        %v310 = vld.sshfl [vmem:[#allocation1 + $0x8] sm:$0xff pattern:$0x75316420]
        %v311 = vld.sshfl [vmem:[#allocation1 + $0x10] sm:$0xff pattern:$0x75316420]
        %312 = vrot.lane.b32.xlu0 %v309, 112
        %v313 = vpop.permute.xlu0 %312
        %314 = vrot.lane.b32.xlu0 %v310, 112
        %v315 = vpop.permute.xlu0 %314
        %316 = vrot.lane.b32.xlu0 %v311, 112
        %v317 = vpop.permute.xlu0 %316
        %vm318 = vcmask 916480
        %v319 = vsel %vm318, %v313, %v315
        %v320 = vsel %vm318, %v315, %v317
        %v323 = vsel %vm238, %v319, 0.0
        %v324 = vsel %vm239, %v320, 0.0
        %325 = vst [vmem:[#allocation3 + $0x30] sm:$0xf] %v323
        %326 = vst [vmem:[#allocation3 + $0x38] sm:$0xf] %v324
        %v327 = vld [vmem:[#allocation2] sm:$0xff]
        %v328 = vld [vmem:[#allocation2 + $0x8] sm:$0xf]
        %331 = vst [vmem:[#allocation1] ss:$2 sm:$0xff] %v327
        %s332 = scalar_lea.vmem [#allocation1], 16
        %333 = vst [vmem:[%s332] ss:$2 sm:$0xff] %v328
        %v334 = vld.sshfl [vmem:[#allocation1] sm:$0xff pattern:$0x75316420]
        %v335 = vld.sshfl [vmem:[#allocation1 + $0x8] sm:$0xff pattern:$0x75316420]
        %v336 = vld.sshfl [vmem:[#allocation1 + $0x10] sm:$0xff pattern:$0x75316420]
        %337 = vrot.lane.b32.xlu0 %v334, 111
        %v338 = vpop.permute.xlu0 %337
        %339 = vrot.lane.b32.xlu0 %v335, 111
        %v340 = vpop.permute.xlu0 %339
        %341 = vrot.lane.b32.xlu0 %v336, 111
        %v342 = vpop.permute.xlu0 %341
        %vm343 = vcmask 908288
        %v344 = vsel %vm343, %v338, %v340
        %v345 = vsel %vm343, %v340, %v342
        %348 = vst [vmem:[#allocation3 + $0x40] sm:$0xf] %v344
        %349 = vst [vmem:[#allocation3 + $0x48] sm:$0xf] %v345
        %v350 = vld [vmem:[#allocation2] sm:$0xff]
        %v351 = vld [vmem:[#allocation2 + $0x8] sm:$0xf]
        %354 = vst [vmem:[#allocation1] ss:$2 sm:$0xff] %v350
        %s355 = scalar_lea.vmem [#allocation1], 16
        %356 = vst [vmem:[%s355] ss:$2 sm:$0xff] %v351
        %v357 = vld.sshfl [vmem:[#allocation1] sm:$0xff pattern:$0x75316420]
        %v358 = vld.sshfl [vmem:[#allocation1 + $0x8] sm:$0xff pattern:$0x75316420]
        %v359 = vld.sshfl [vmem:[#allocation1 + $0x10] sm:$0xff pattern:$0x75316420]
        %360 = vrot.lane.b32.xlu0 %v357, 110
        %v361 = vpop.permute.xlu0 %360
        %362 = vrot.lane.b32.xlu0 %v358, 110
        %v363 = vpop.permute.xlu0 %362
        %364 = vrot.lane.b32.xlu0 %v359, 110
        %v365 = vpop.permute.xlu0 %364
        %vm366 = vcmask 900096
        %v367 = vsel %vm366, %v361, %v363
        %v368 = vsel %vm366, %v363, %v365
        %v371 = vsel %vm277, %v367, 0.0
        %v372 = vsel %vm278, %v368, 0.0
        %373 = vst [vmem:[#allocation3 + $0x50] sm:$0xf] %v371
        %374 = vst [vmem:[#allocation3 + $0x58] sm:$0xf] %v372
        %v375 = vld [vmem:[#allocation2] sm:$0xff]
        %v376 = vld [vmem:[#allocation2 + $0x8] sm:$0xf]
        %379 = vst [vmem:[#allocation1] ss:$2 sm:$0xff] %v375
        %s380 = scalar_lea.vmem [#allocation1], 16
        %381 = vst [vmem:[%s380] ss:$2 sm:$0xff] %v376
        %v382 = vld.sshfl [vmem:[#allocation1] sm:$0xff pattern:$0x75316420]
        %v383 = vld.sshfl [vmem:[#allocation1 + $0x8] sm:$0xff pattern:$0x75316420]
        %v384 = vld.sshfl [vmem:[#allocation1 + $0x10] sm:$0xff pattern:$0x75316420]
        %385 = vrot.lane.b32.xlu0 %v382, 96
        %v386 = vpop.permute.xlu0 %385
        %387 = vrot.lane.b32.xlu0 %v383, 96
        %v388 = vpop.permute.xlu0 %387
        %389 = vrot.lane.b32.xlu0 %v384, 96
        %v390 = vpop.permute.xlu0 %389
        %vm391 = vcmask 785408
        %v392 = vsel %vm391, %v386, %v388
        %v393 = vsel %vm391, %v388, %v390
        %v396 = vsel %vm238, %v392, 0.0
        %v397 = vsel %vm239, %v393, 0.0
        %398 = vst [vmem:[#allocation3 + $0x60] sm:$0xf] %v396
        %399 = vst [vmem:[#allocation3 + $0x68] sm:$0xf] %v397
        %v400 = vld [vmem:[#allocation2] sm:$0xff]
        %v401 = vld [vmem:[#allocation2 + $0x8] sm:$0xf]
        %404 = vst [vmem:[#allocation1] ss:$2 sm:$0xff] %v400
        %s405 = scalar_lea.vmem [#allocation1], 16
        %406 = vst [vmem:[%s405] ss:$2 sm:$0xff] %v401
        %v407 = vld.sshfl [vmem:[#allocation1] sm:$0xff pattern:$0x75316420]
        %v408 = vld.sshfl [vmem:[#allocation1 + $0x8] sm:$0xff pattern:$0x75316420]
        %v409 = vld.sshfl [vmem:[#allocation1 + $0x10] sm:$0xff pattern:$0x75316420]
        %410 = vrot.lane.b32.xlu0 %v407, 95
        %v411 = vpop.permute.xlu0 %410
        %412 = vrot.lane.b32.xlu0 %v408, 95
        %v413 = vpop.permute.xlu0 %412
        %414 = vrot.lane.b32.xlu0 %v409, 95
        %v415 = vpop.permute.xlu0 %414
        %vm416 = vcmask 777216
        %v417 = vsel %vm416, %v411, %v413
        %v418 = vsel %vm416, %v413, %v415
        %421 = vst [vmem:[#allocation3 + $0x70] sm:$0xf] %v417
        %422 = vst [vmem:[#allocation3 + $0x78] sm:$0xf] %v418
        %v423 = vld [vmem:[#allocation2] sm:$0xff]
        %v424 = vld [vmem:[#allocation2 + $0x8] sm:$0xf]
        %427 = vst [vmem:[#allocation1] ss:$2 sm:$0xff] %v423
        %s428 = scalar_lea.vmem [#allocation1], 16
        %429 = vst [vmem:[%s428] ss:$2 sm:$0xff] %v424
        %v430 = vld.sshfl [vmem:[#allocation1] sm:$0xff pattern:$0x75316420]
        %v431 = vld.sshfl [vmem:[#allocation1 + $0x8] sm:$0xff pattern:$0x75316420]
        %v432 = vld.sshfl [vmem:[#allocation1 + $0x10] sm:$0xff pattern:$0x75316420]
        %433 = vrot.lane.b32.xlu0 %v430, 94
        %v434 = vpop.permute.xlu0 %433
        %435 = vrot.lane.b32.xlu0 %v431, 94
        %v436 = vpop.permute.xlu0 %435
        %437 = vrot.lane.b32.xlu0 %v432, 94
        %v438 = vpop.permute.xlu0 %437
        %vm439 = vcmask 769024
        %v440 = vsel %vm439, %v434, %v436
        %v441 = vsel %vm439, %v436, %v438
        %v444 = vsel %vm277, %v440, 0.0
        %v445 = vsel %vm278, %v441, 0.0
        %446 = vst [vmem:[#allocation3 + $0x80] sm:$0xf] %v444
        %447 = vst [vmem:[#allocation3 + $0x88] sm:$0xf] %v445
        %v448 = vld [vmem:[#allocation3] sm:$0xff]
        %v449 = vld [vmem:[#allocation3 + $0x8] sm:$0xff]
        %v450 = vld [vmem:[#allocation3 + $0x10] sm:$0xff]
        %v451 = vld [vmem:[#allocation3 + $0x18] sm:$0xff]
        %v452 = vld [vmem:[#allocation3 + $0x20] sm:$0xff]
        %v453 = vld [vmem:[#allocation3 + $0x28] sm:$0xff]
        %v454 = vld [vmem:[#allocation3 + $0x30] sm:$0xff]
        %v455 = vld [vmem:[#allocation3 + $0x38] sm:$0xff]
        %v456 = vld [vmem:[#allocation3 + $0x40] sm:$0xff]
        %v457 = vld [vmem:[#allocation3 + $0x48] sm:$0xff]
        %v458 = vld [vmem:[#allocation3 + $0x50] sm:$0xff]
        %v459 = vld [vmem:[#allocation3 + $0x58] sm:$0xff]
        %v460 = vld [vmem:[#allocation3 + $0x60] sm:$0xff]
        %v461 = vld [vmem:[#allocation3 + $0x68] sm:$0xff]
        %v462 = vld [vmem:[#allocation3 + $0x70] sm:$0xff]
        %v463 = vld [vmem:[#allocation3 + $0x78] sm:$0xff]
        %v464 = vld [vmem:[#allocation3 + $0x80] sm:$0xff]
        %v465 = vld [vmem:[#allocation3 + $0x88] sm:$0xff]
        %vm466 = vcmask 588800
        %v468 = vsel %vm466, %v234, 0
        %470 = vmatpush.msra.mxu0 0.0
        %471 = vmatpush.msra.mxu0 0.0
        %472 = vmatpush.msra.mxu0 0.0
        %473 = vmatpush.msra.mxu0 0.0
        %474 = vmatpush.msra.mxu0 0.0
        %475 = vmatpush.msra.mxu0 0.0
        %476 = vmatpush.msra.mxu0 0.0
        %477 = vmatpush.msra.mxu0 %v464
        %478 = vmatpush.msra.mxu0 %v462
        %479 = vmatpush.msra.mxu0 %v460
        %480 = vmatpush.msra.mxu0 %v458
        %481 = vmatpush.msra.mxu0 %v456
        %482 = vmatpush.msra.mxu0 %v454
        %483 = vmatpush.msra.mxu0 %v452
        %484 = vmatpush.msra.mxu0 %v450
        %485 = vmatpush.msra.mxu0 %v448
        %486 = vmatmul.f32.gmra.mxu0 %v468
        %v487 = vpop.f32.mrf.mxu0
        %v488 = vadd.f32 0.0, %v487
        %489 = vdwg.mxu0
        %490 = vmatpush.msra.mxu0 0.0
        %491 = vmatpush.msra.mxu0 0.0
        %492 = vmatpush.msra.mxu0 0.0
        %493 = vmatpush.msra.mxu0 0.0
        %494 = vmatpush.msra.mxu0 0.0
        %495 = vmatpush.msra.mxu0 0.0
        %496 = vmatpush.msra.mxu0 0.0
        %497 = vmatpush.msra.mxu0 %v465
        %498 = vmatpush.msra.mxu0 %v463
        %499 = vmatpush.msra.mxu0 %v461
        %500 = vmatpush.msra.mxu0 %v459
        %501 = vmatpush.msra.mxu0 %v457
        %502 = vmatpush.msra.mxu0 %v455
        %503 = vmatpush.msra.mxu0 %v453
        %504 = vmatpush.msra.mxu0 %v451
        %505 = vmatpush.msra.mxu0 %v449
        %506 = vmatmul.f32.gmra.mxu0 %v468
        %v507 = vpop.f32.mrf.mxu0
        %v508 = vadd.f32 0.0, %v507
        %509 = vdwg.mxu0
        %v510 = vadd.f32 %v488, %v508
        %511 = vadd.xlane.f32.xlu0 %v510
        %v512 = vpop.xlane.xlu0 %511
        %vm513 = vcmask 7168
        %514 = vst.msk [vmem:[%s176] sm:$0xff] %vm513, %v512
        %v515 = vmul.f32 %v488, %v488
        %v516 = vmul.f32 %v508, %v508
        %v517 = vadd.f32 %v515, %v516
        %518 = vadd.xlane.f32.xlu0 %v517
        %v519 = vpop.xlane.xlu0 %518
        %vm520 = vcmask 15368
        %521 = vst.msk [vmem:[%s176] sm:$0xff] %vm520, %v519
        %p522 = scmp.lt.s32.totalorder %s17, 1
        %s523 = scalar_select %p522, %s17, 1
        %s524 = smul.addr %s523, 8
        %s525 = scalar_lea.vmem %s2, %s524
        // Predicated region
        $region37: #{tpu_custom_call.1} parent=27 // pred_check
          %p526 = pneg %p82
        $region38: #{tpu_custom_call.1} parent=27 // pred_check_branch
          %528 = sbr.rel (%p526) target = $region40
        $region39: #{tpu_custom_call.1} parent=27 // pred_region
          _
        $region40: #{tpu_custom_call.1} parent=27 // pred_fallthru
          _
      $region28: #{tpu_custom_call.1} parent=5 // pred_fallthru
        _
      %p529 = scmp.le.s32.totalorder 2, %s12
      // Predicated region
      $region41: #{tpu_custom_call.1} parent=5 // pred_check
        %p530 = pneg %p529
      $region42: #{tpu_custom_call.1} parent=5 // pred_check_branch
        %532 = sbr.rel (%p530) target = $region44
      $region43: #{tpu_custom_call.1} parent=5 // pred_region
        %s533 = ssub.s32 %s12, 2
        // Predicated region
        $region45: #{tpu_custom_call.1} parent=43 // pred_check
          %p534 = pneg %p88
        $region46: #{tpu_custom_call.1} parent=43 // pred_check_branch
          %536 = sbr.rel (%p534) target = $region48
        $region47: #{tpu_custom_call.1} parent=43 // pred_region
          %p537 = scmp.lt.s32.totalorder %s18, 1
          %s538 = scalar_select %p537, %s18, 1
          %s539 = smul.addr %s538, 8
          %s540 = scalar_lea.vmem %s2, %s539
        $region48: #{tpu_custom_call.1} parent=43 // pred_fallthru
          _
      $region44: #{tpu_custom_call.1} parent=5 // pred_fallthru
        _
    $region6: #{tpu_custom_call.1} parent=1 // loop_footer
      %s16 = sadd.s32 1, %s12
    $region7: #{tpu_custom_call.1} parent=1 // loop_footer_branch
      %11 = sbr.rel target = $region3
    $region8: #{tpu_custom_call.1} parent=1 // loop_exit
      _
    %541 = vsyncpa [#allocation5], 1
    %s542 = scalar_lea.sflag [#allocation5], 1
    %543 = vsyncpa %s542, 1
    %544 = vsyncpa [#allocation7], 1

</llo_original>
